<compile_context>
chip_gen: v7x
topology: tpu7x:2x2x1
jax: 0.10.0
libtpu: 0.0.40
codegen_flags: <defaults>
</compile_context>

<pallas_src>
import jax
import jax.numpy as jnp
from jax.experimental import pallas as pl
from jax.experimental.pallas import tpu as pltpu


def _round_up(v, m):
    return (v + m - 1) // m * m


def _pad2d(x, rows, cols):
    return jnp.pad(x, ((0, rows - x.shape[0]), (0, cols - x.shape[1])))


def _pad3d(x, d1, d2):
    return jnp.pad(x, ((0, 0), (0, d1 - x.shape[1]), (0, d2 - x.shape[2])))


def gin_kernel(a_ref, x_ref, w0t_ref, w1t_ref, o_ref):
    # a_ref:   [1, Np, Np] bf16, A_hat = A + I  (A[dst, src] = #edges src->dst)
    # x_ref:   [1, Np, Dp] bf16 node features (zero-padded)
    # w0t_ref: [Dp, Hp]    bf16 (= W0.T, zero-padded)  -- resident across grid steps
    # w1t_ref: [Hp, Cp]    bf16 (= W1.T, zero-padded)  -- resident across grid steps
    # o_ref:   [1, Np, Cp] f32 logits (padded; real part is [:N, :C])
    a = a_ref[0]          # bf16, stays bf16 (full-rate MXU path, no f32 copy)
    x = x_ref[0]          # bf16

    # ---- GINConv layer 0:  h1 = relu(((A + I) @ x) @ W0.T) ----
    h0 = jnp.dot(a, x, preferred_element_type=jnp.float32)
    h1 = jnp.maximum(
        jnp.dot(h0.astype(jnp.bfloat16), w0t_ref[...],
                preferred_element_type=jnp.float32), 0.0)
    # dropout(p=0.5) in eval mode -> identity

    # ---- GINConv layer 1:  out = ((A + I) @ h1) @ W1.T ----
    h2 = jnp.dot(a, h1.astype(jnp.bfloat16), preferred_element_type=jnp.float32)
    o_ref[0] = jnp.dot(h2.astype(jnp.bfloat16), w1t_ref[...],
                       preferred_element_type=jnp.float32)


def gin_forward(a_hat, x, w0, w1):
    """Batched 2-layer GIN forward, one graph per grid step.

    a_hat: [B,N,N] f32  (A + I);  x: [B,N,D_in] f32;
    w0: [H,D_in], w1: [C,H]  (torch Linear weight layout, bias=False).
    Returns [B,N,C] f32 logits.
    """
    b, n, d_in = x.shape
    h = w0.shape[0]
    c = w1.shape[0]

    np_ = _round_up(n, 128)
    dp = _round_up(d_in, 128)
    hp = _round_up(h, 128)
    cp = _round_up(c, 128)

    # Lane-dense, MXU-aligned, bf16 operands (zero padding does not change the math;
    # adjacency entries are small integer counts -> exact in bf16 up to 256).
    a_p = _pad3d(a_hat, np_, np_).astype(jnp.bfloat16)
    x_p = _pad3d(x, np_, dp).astype(jnp.bfloat16)
    w0t_p = _pad2d(w0.T, dp, hp).astype(jnp.bfloat16)     # [Dp, Hp]
    w1t_p = _pad2d(w1.T, hp, cp).astype(jnp.bfloat16)     # [Hp, Cp]

    # Real (unpadded) work, so the hint doesn't over-serialize the surrounding graph.
    flops = 2 * b * (n * n * d_in + n * d_in * h + n * n * h + n * h * c)
    bytes_accessed = (b * (n * n * 2 + n * d_in * 2 + n * c * 4)
                      + (d_in * h + h * c) * 2)

    out_p = pl.pallas_call(
        gin_kernel,
        out_shape=jax.ShapeDtypeStruct((b, np_, cp), jnp.float32),
        grid=(b,),
        in_specs=[
            pl.BlockSpec((1, np_, np_), lambda i: (i, 0, 0)),
            pl.BlockSpec((1, np_, dp), lambda i: (i, 0, 0)),
            pl.BlockSpec((dp, hp), lambda i: (0, 0)),      # weights stay resident
            pl.BlockSpec((hp, cp), lambda i: (0, 0)),
        ],
        out_specs=pl.BlockSpec((1, np_, cp), lambda i: (i, 0, 0)),
        compiler_params=pltpu.CompilerParams(
            dimension_semantics=("parallel",)),            # 2-TC sharding on v7x
        cost_estimate=pl.CostEstimate(
            flops=flops, transcendentals=0, bytes_accessed=bytes_accessed),
    )(a_p, x_p, w0t_p, w1t_p)

    return out_p[:, :n, :c]


def build_adjacency_hat(edge_index, num_nodes):
    """edge_index: [2, E] int32, row0 = src, row1 = dst (PyG source_to_target flow).
    Returns A_hat = A + I with A[dst, src] += 1 per edge, so
    (A_hat @ X)[i] = (1 + eps) * x_i + sum_{j in N(i)} x_j   (eps = 0)."""
    src = edge_index[0]
    dst = edge_index[1]
    a = jnp.zeros((num_nodes, num_nodes), dtype=jnp.float32)
    a = a.at[dst, src].add(1.0)
    return a + jnp.eye(num_nodes, dtype=jnp.float32)


def reference_forward_f32(a_hat, x, w0, w1):
    h = a_hat @ x
    h = jnp.maximum(h @ w0.T, 0.0)
    h = a_hat @ h
    return h @ w1.T


def reference_forward_bf16(a_hat, x, w0, w1):
    # Mirrors the kernel's bf16-operand / f32-accumulation path for a tight check.
    bf = jnp.bfloat16
    a = a_hat.astype(bf)
    h0 = jnp.dot(a, x.astype(bf), preferred_element_type=jnp.float32)
    h1 = jnp.maximum(jnp.dot(h0.astype(bf), w0.T.astype(bf),
                             preferred_element_type=jnp.float32), 0.0)
    h2 = jnp.dot(a, h1.astype(bf), preferred_element_type=jnp.float32)
    return jnp.dot(h2.astype(bf), w1.T.astype(bf),
                   preferred_element_type=jnp.float32)


if __name__ == "__main__":
    key = jax.random.PRNGKey(0)
    k_x, k_e, k_w0, k_w1 = jax.random.split(key, 4)

    num_graphs = 4
    num_nodes = 64
    num_edges = 256
    input_dim = 16
    out_dim = 32
    class_num = 8

    # Deterministic synthetic batch of graphs + shared parameters.
    x = jax.random.normal(k_x, (num_graphs, num_nodes, input_dim), dtype=jnp.float32)
    edge_index = jax.random.randint(
        k_e, (num_graphs, 2, num_edges), 0, num_nodes, dtype=jnp.int32)

    # torch Linear(in, out, bias=False) weight shape is [out, in]
    w0 = jax.random.uniform(k_w0, (out_dim, input_dim), dtype=jnp.float32,
                            minval=-1.0, maxval=1.0) * (1.0 / jnp.sqrt(input_dim))
    w1 = jax.random.uniform(k_w1, (class_num, out_dim), dtype=jnp.float32,
                            minval=-1.0, maxval=1.0) * (1.0 / jnp.sqrt(out_dim))

    a_hat = jnp.stack(
        [build_adjacency_hat(edge_index[g], num_nodes) for g in range(num_graphs)])
    # bf16 adjacency is exact only while per-pair edge multiplicity (+ self loop)
    # stays <= 256.
    assert int(jnp.max(a_hat)) <= 256

    out = gin_forward(a_hat, x, w0, w1)
    out = jax.block_until_ready(out)
    assert out.shape == (num_graphs, num_nodes, class_num)

    for g in range(num_graphs):
        ref_bf16 = reference_forward_bf16(a_hat[g], x[g], w0, w1)
        ref_f32 = reference_forward_f32(a_hat[g], x[g], w0, w1)
        # Tight check vs the matched bf16-operand reference.
        assert jnp.allclose(out[g], ref_bf16, atol=1e-2, rtol=1e-2)
        # Loose sanity check vs the full-f32 reference (expected bf16 quantization).
        assert jnp.allclose(out[g], ref_f32, atol=0.5, rtol=0.1)

    print("KERNEL_OK")
</pallas_src>

<mosaic_0001>
module attributes {stable_mosaic.version = 11 : i64} {
  func.func @gin_kernel(%arg0: i32, %arg1: memref<1x128x128xbf16, #tpu.memory_space<vmem>>, %arg2: memref<1x128x128xbf16, #tpu.memory_space<vmem>>, %arg3: memref<128x128xbf16, #tpu.memory_space<vmem>>, %arg4: memref<128x128xbf16, #tpu.memory_space<vmem>>, %arg5: memref<1x128x128xf32, #tpu.memory_space<vmem>>) attributes {dimension_semantics = [#tpu.dimension_semantics<parallel>], iteration_bounds = array<i64: 4>, scalar_prefetch = 0 : i64, scratch_operands = 0 : i64, tpu.core_type = #tpu.core_type<tc>, window_params = [{transform_indices = @transform_0, window_bounds = array<i64: 1, 128, 128>}, {transform_indices = @transform_1, window_bounds = array<i64: 1, 128, 128>}, {pipeline_mode = #tpu.pipeline_mode<synchronous>, transform_indices = @transform_2, window_bounds = array<i64: 128, 128>}, {pipeline_mode = #tpu.pipeline_mode<synchronous>, transform_indices = @transform_3, window_bounds = array<i64: 128, 128>}, {transform_indices = @transform_4, window_bounds = array<i64: 1, 128, 128>}]} {
    %c0 = arith.constant 0 : index
    %c0_0 = arith.constant 0 : index
    %c0_1 = arith.constant 0 : index
    %0 = vector.load %arg1[%c0, %c0_0, %c0_1] : memref<1x128x128xbf16, #tpu.memory_space<vmem>>, vector<1x128x128xbf16>
    %1 = vector.shape_cast %0 : vector<1x128x128xbf16> to vector<128x128xbf16>
    %c0_2 = arith.constant 0 : index
    %c0_3 = arith.constant 0 : index
    %c0_4 = arith.constant 0 : index
    %2 = vector.load %arg2[%c0_2, %c0_3, %c0_4] : memref<1x128x128xbf16, #tpu.memory_space<vmem>>, vector<1x128x128xbf16>
    %3 = vector.shape_cast %2 : vector<1x128x128xbf16> to vector<128x128xbf16>
    %cst = arith.constant dense<0.000000e+00> : vector<128x128xf32>
    %4 = tpu.matmul %1, %3, %cst {dimension_numbers = #tpu.dot_dimension_numbers<[1], [0], [0], [1], [0, 0, 1, 1], [], []>} : vector<128x128xbf16>, vector<128x128xbf16>, vector<128x128xf32> -> vector<128x128xf32>
    %5 = arith.truncf %4 : vector<128x128xf32> to vector<128x128xbf16>
    %c0_5 = arith.constant 0 : index
    %c0_6 = arith.constant 0 : index
    %6 = vector.load %arg3[%c0_5, %c0_6] : memref<128x128xbf16, #tpu.memory_space<vmem>>, vector<128x128xbf16>
    %cst_7 = arith.constant dense<0.000000e+00> : vector<128x128xf32>
    %7 = tpu.matmul %5, %6, %cst_7 {dimension_numbers = #tpu.dot_dimension_numbers<[1], [0], [0], [1], [0, 0, 1, 1], [], []>} : vector<128x128xbf16>, vector<128x128xbf16>, vector<128x128xf32> -> vector<128x128xf32>
    %cst_8 = arith.constant 0.000000e+00 : f32
    %8 = vector.broadcast %cst_8 : f32 to vector<128x128xf32>
    %9 = arith.maximumf %7, %8 : vector<128x128xf32>
    %10 = arith.truncf %9 : vector<128x128xf32> to vector<128x128xbf16>
    %cst_9 = arith.constant dense<0.000000e+00> : vector<128x128xf32>
    %11 = tpu.matmul %1, %10, %cst_9 {dimension_numbers = #tpu.dot_dimension_numbers<[1], [0], [0], [1], [0, 0, 1, 1], [], []>} : vector<128x128xbf16>, vector<128x128xbf16>, vector<128x128xf32> -> vector<128x128xf32>
    %12 = arith.truncf %11 : vector<128x128xf32> to vector<128x128xbf16>
    %c0_10 = arith.constant 0 : index
    %c0_11 = arith.constant 0 : index
    %13 = vector.load %arg4[%c0_10, %c0_11] : memref<128x128xbf16, #tpu.memory_space<vmem>>, vector<128x128xbf16>
    %cst_12 = arith.constant dense<0.000000e+00> : vector<128x128xf32>
    %14 = tpu.matmul %12, %13, %cst_12 {dimension_numbers = #tpu.dot_dimension_numbers<[1], [0], [0], [1], [0, 0, 1, 1], [], []>} : vector<128x128xbf16>, vector<128x128xbf16>, vector<128x128xf32> -> vector<128x128xf32>
    %c0_13 = arith.constant 0 : index
    %c0_14 = arith.constant 0 : index
    %c0_15 = arith.constant 0 : index
    %15 = vector.load %arg5[%c0_13, %c0_14, %c0_15] : memref<1x128x128xf32, #tpu.memory_space<vmem>>, vector<1x128x128xf32>
    %16 = vector.shape_cast %15 : vector<1x128x128xf32> to vector<128x128xf32>
    %17 = vector.shape_cast %14 : vector<128x128xf32> to vector<1x128x128xf32>
    tpu.vector_store %arg5[%c0_13, %c0_14, %c0_15], %17 {strides = array<i32>} : memref<1x128x128xf32, #tpu.memory_space<vmem>>, vector<1x128x128xf32>,
    return
  }
  func.func @transform_0(%arg0: i32) -> (i32, i32, i32) {
    %c0_i32 = arith.constant 0 : i32
    %c0_i32_0 = arith.constant 0 : i32
    %c0_i32_1 = arith.constant 0 : i32
    return %arg0, %c0_i32, %c0_i32_0 : i32, i32, i32
  }
  func.func @transform_1(%arg0: i32) -> (i32, i32, i32) {
    %c0_i32 = arith.constant 0 : i32
    %c0_i32_0 = arith.constant 0 : i32
    %c0_i32_1 = arith.constant 0 : i32
    return %arg0, %c0_i32, %c0_i32_0 : i32, i32, i32
  }
  func.func @transform_2(%arg0: i32) -> (i32, i32) {
    %c0_i32 = arith.constant 0 : i32
    %c0_i32_0 = arith.constant 0 : i32
    %c0_i32_1 = arith.constant 0 : i32
    return %c0_i32, %c0_i32_0 : i32, i32
  }
  func.func @transform_3(%arg0: i32) -> (i32, i32) {
    %c0_i32 = arith.constant 0 : i32
    %c0_i32_0 = arith.constant 0 : i32
    %c0_i32_1 = arith.constant 0 : i32
    return %c0_i32, %c0_i32_0 : i32, i32
  }
  func.func @transform_4(%arg0: i32) -> (i32, i32, i32) {
    %c0_i32 = arith.constant 0 : i32
    %c0_i32_0 = arith.constant 0 : i32
    %c0_i32_1 = arith.constant 0 : i32
    return %arg0, %c0_i32, %c0_i32_0 : i32, i32, i32
  }
}

</mosaic_0001>

<llo_original>
// kernel: tpu_custom_call.1
$region0: #{tpu_custom_call.1}
  #allocation0 [shape = 'u32[]', space=smem, size = 0x4, offset = 0x4, fixed_abs, tag = 'smem constant byte address 0x4 - core index']
  #allocation1 [shape = 'u32[144,128]{1,0:T(1,128)}', space=vmem, size = 0x12000, scoped, tag = 'internal scratch']
  %s0 = inlined_call_operand.hbm [shape: bf16[4,128,128], index: 0, kind: input, shape index: {}]
  %s1 = inlined_call_operand.hbm [shape: bf16[4,128,128], index: 1, kind: input, shape index: {}]
  %s2 = inlined_call_operand.hbm [shape: bf16[128,128], index: 2, kind: input, shape index: {}]
  %s3 = inlined_call_operand.hbm [shape: bf16[128,128], index: 3, kind: input, shape index: {}]
  %s4 = inlined_call_operand.hbm [shape: f32[4,128,128], index: 4, kind: output, shape index: {}]
  %s5 = sld [smem:[#allocation0]]
  $region65: #{tpu_custom_call.1} parent=0
    _
  %s7 = ssub.s32 1, %s5
  %s8 = scalar_select 0, %s7, %s5
  $region1: #{tpu_custom_call.1} parent=0
    #allocation2 [shape = 'u8[65536]{0}', space=vmem, size = 0x10000, scoped, tag = 'input window, operand 0']
    #allocation3 [shape = 's32[2]{0}', space=sflag, size = 0x8, scoped, tag = 'scoped memory for tpu_custom_call.1']
    #allocation4 [shape = 's32[2]{0}', space=sflag, size = 0x8, scoped, tag = 'scoped memory for tpu_custom_call.1']
    #allocation5 [shape = 'u8[65536]{0}', space=vmem, size = 0x10000, scoped, tag = 'input window, operand 1']
    #allocation6 [shape = 's32[2]{0}', space=sflag, size = 0x8, scoped, tag = 'scoped memory for tpu_custom_call.1']
    #allocation7 [shape = 'u8[32768]{0}', space=vmem, size = 0x8000, scoped, tag = 'input window, operand 2, single buffered']
    #allocation8 [shape = 'u8[32768]{0}', space=vmem, size = 0x8000, scoped, tag = 'input window, operand 3, single buffered']
    #allocation9 [shape = 's32[1]{0}', space=sflag, size = 0x4, scoped, tag = 'scoped memory for tpu_custom_call.1']
    #allocation10 [shape = 'u8[131072]{0}', space=vmem, size = 0x20000, scoped, tag = 'output window, operand 0']
    %9 = vsyncpa [#allocation3], 0
    %s10 = scalar_lea.sflag [#allocation3], 1
    %11 = vsyncpa %s10, 0
    %12 = vsyncpa [#allocation6], 0
    %s13 = scalar_lea.sflag [#allocation6], 1
    %14 = vsyncpa %s13, 0
    %15 = vsyncpa [#allocation9], 0
    %16 = vsyncpa [#allocation4], 0
    %s17 = scalar_lea.sflag [#allocation4], 1
    %18 = vsyncpa %s17, 0
    loop: start=0, step=1, limit=6
    $region2: #{tpu_custom_call.1} parent=1 // loop_pre_header
      _
    $region3: #{tpu_custom_call.1} parent=1 // loop_header
      %s20 = sphi 0, %s24
      %p21 = scmp.ge.s32.totalorder %s20, 6
      %s30 = sphi 0, %s32
      %s33 = sphi 0, %s30
      %s34 = sphi 0, %s33
      %s50 = sphi 0, %s34
      %s56 = sphi 0, %s58
      %s59 = sphi 0, %s56
      %s60 = sphi 0, %s59
      %s76 = sphi 0, %s60
      %s80 = sphi 0, %s80
      %s82 = sphi 0, %s80
      %s83 = sphi 0, %s82
      %s97 = sphi 0, %s83
      %s101 = sphi 0, %s101
      %s103 = sphi 0, %s101
      %s104 = sphi 0, %s103
      %s118 = sphi 0, %s104
      %s124 = sphi 0, %s126
      %s127 = sphi 0, %s124
      %s128 = sphi 0, %s127
      %s144 = sphi 0, %s128
    $region4: #{tpu_custom_call.1} parent=1 // loop_header_branch
      %23 = sbr.rel (%p21) target = $region8
    $region5: #{tpu_custom_call.1} parent=1 // loop_body
      %s25 = ssub.s32 %s20, 1
      %s26 = ssub.s32 %s20, 2
      %s27 = sadd.s32 %s20, 1
      %s28 = ssub.s32 %s20, %s27
      %p29 = scmp.eq.s32.totalorder %s28, 0
      %s31 = sadd.s32 %s30, 1
      %s32 = scalar_select %p29, %s30, %s31
      %p35 = pneg %p29
      %p36 = scmp.eq.s32.totalorder %s20, 3
      %p37 = por %p35, %p36
      %p38 = scmp.ne.s32.totalorder %s30, %s33
      %p39 = scmp.eq.s32.totalorder %s20, 0
      %p40 = por %p38, %p39
      %p41 = scmp.ne.s32.totalorder %s30, %s33
      %p42 = scmp.eq.s32.totalorder %s25, 3
      %p43 = por %p41, %p42
      %p44 = scmp.ne.s32.totalorder %s33, %s34
      %p45 = scmp.eq.s32.totalorder %s25, 0
      %p46 = por %p44, %p45
      %p47 = scmp.ne.s32.totalorder %s33, %s34
      %p48 = scmp.eq.s32.totalorder %s26, 3
      %p49 = por %p47, %p48
      %p51 = scmp.ne.s32.totalorder %s34, %s50
      %p52 = scmp.eq.s32.totalorder %s26, 0
      %p53 = por %p51, %p52
      %s54 = ssub.s32 %s20, %s27
      %p55 = scmp.eq.s32.totalorder %s54, 0
      %s57 = sadd.s32 %s56, 1
      %s58 = scalar_select %p55, %s56, %s57
      %p61 = pneg %p55
      %p62 = scmp.eq.s32.totalorder %s20, 3
      %p63 = por %p61, %p62
      %p64 = scmp.ne.s32.totalorder %s56, %s59
      %p65 = scmp.eq.s32.totalorder %s20, 0
      %p66 = por %p64, %p65
      %p67 = scmp.ne.s32.totalorder %s56, %s59
      %p68 = scmp.eq.s32.totalorder %s25, 3
      %p69 = por %p67, %p68
      %p70 = scmp.ne.s32.totalorder %s59, %s60
      %p71 = scmp.eq.s32.totalorder %s25, 0
      %p72 = por %p70, %p71
      %p73 = scmp.ne.s32.totalorder %s59, %s60
      %p74 = scmp.eq.s32.totalorder %s26, 3
      %p75 = por %p73, %p74
      %p77 = scmp.ne.s32.totalorder %s60, %s76
      %p78 = scmp.eq.s32.totalorder %s26, 0
      %p79 = por %p77, %p78
      %s81 = sadd.s32 %s80, 1
      %p84 = scmp.eq.s32.totalorder %s20, 3
      %p85 = scmp.ne.s32.totalorder %s80, %s82
      %p86 = scmp.eq.s32.totalorder %s20, 0
      %p87 = por %p85, %p86
      %p88 = scmp.ne.s32.totalorder %s80, %s82
      %p89 = scmp.eq.s32.totalorder %s25, 3
      %p90 = por %p88, %p89
      %p91 = scmp.ne.s32.totalorder %s82, %s83
      %p92 = scmp.eq.s32.totalorder %s25, 0
      %p93 = por %p91, %p92
      %p94 = scmp.ne.s32.totalorder %s82, %s83
      %p95 = scmp.eq.s32.totalorder %s26, 3
      %p96 = por %p94, %p95
      %p98 = scmp.ne.s32.totalorder %s83, %s97
      %p99 = scmp.eq.s32.totalorder %s26, 0
      %p100 = por %p98, %p99
      %s102 = sadd.s32 %s101, 1
      %p105 = scmp.eq.s32.totalorder %s20, 3
      %p106 = scmp.ne.s32.totalorder %s101, %s103
      %p107 = scmp.eq.s32.totalorder %s20, 0
      %p108 = por %p106, %p107
      %p109 = scmp.ne.s32.totalorder %s101, %s103
      %p110 = scmp.eq.s32.totalorder %s25, 3
      %p111 = por %p109, %p110
      %p112 = scmp.ne.s32.totalorder %s103, %s104
      %p113 = scmp.eq.s32.totalorder %s25, 0
      %p114 = por %p112, %p113
      %p115 = scmp.ne.s32.totalorder %s103, %s104
      %p116 = scmp.eq.s32.totalorder %s26, 3
      %p117 = por %p115, %p116
      %p119 = scmp.ne.s32.totalorder %s104, %s118
      %p120 = scmp.eq.s32.totalorder %s26, 0
      %p121 = por %p119, %p120
      %s122 = ssub.s32 %s20, %s27
      %p123 = scmp.eq.s32.totalorder %s122, 0
      %s125 = sadd.s32 %s124, 1
      %s126 = scalar_select %p123, %s124, %s125
      %p129 = pneg %p123
      %p130 = scmp.eq.s32.totalorder %s20, 3
      %p131 = por %p129, %p130
      %p132 = scmp.ne.s32.totalorder %s124, %s127
      %p133 = scmp.eq.s32.totalorder %s20, 0
      %p134 = por %p132, %p133
      %p135 = scmp.ne.s32.totalorder %s124, %s127
      %p136 = scmp.eq.s32.totalorder %s25, 3
      %p137 = por %p135, %p136
      %p138 = scmp.ne.s32.totalorder %s127, %s128
      %p139 = scmp.eq.s32.totalorder %s25, 0
      %p140 = por %p138, %p139
      %p141 = scmp.ne.s32.totalorder %s127, %s128
      %p142 = scmp.eq.s32.totalorder %s26, 3
      %p143 = por %p141, %p142
      %p145 = scmp.ne.s32.totalorder %s128, %s144
      %p146 = scmp.eq.s32.totalorder %s26, 0
      %p147 = por %p145, %p146
      %p148 = scmp.le.s32.totalorder 1, %s20
      %p149 = scmp.lt.s32.totalorder %s20, 5
      %p150 = pnand %p148, %p149
      %p151 = pneg %p150
      // Predicated region
      $region9: #{tpu_custom_call.1} parent=5 // pred_check
        _
      $region10: #{tpu_custom_call.1} parent=5 // pred_check_branch
        %153 = sbr.rel (%p150) target = $region12
      $region11: #{tpu_custom_call.1} parent=5 // pred_region
        %s154 = ssub.s32 %s20, 1
        // Predicated region
        $region13: #{tpu_custom_call.1} parent=11 // pred_check
          %p155 = pneg %p93
        $region14: #{tpu_custom_call.1} parent=11 // pred_check_branch
          %157 = sbr.rel (%p155) target = $region16
        $region15: #{tpu_custom_call.1} parent=11 // pred_region
          %s159 = ssub.s32 1024, 1024
          %160 = vsyncadd [#allocation6], %s159
          %s161 = sshll.u32 [#allocation7], 4
          %s162 = int_to_ptr.vmem [resolvable:$true] %s161
          %167 = dma.hbm_to_vmem [thread:$0]  %s2, 1024, %s162, [#allocation6], 64, 64, 4
        $region16: #{tpu_custom_call.1} parent=11 // pred_fallthru
          _
        // Predicated region
        $region17: #{tpu_custom_call.1} parent=11 // pred_check
          %p168 = pneg %p114
        $region18: #{tpu_custom_call.1} parent=11 // pred_check_branch
          %170 = sbr.rel (%p168) target = $region20
        $region19: #{tpu_custom_call.1} parent=11 // pred_region
          %s172 = ssub.s32 1024, 1024
          %173 = vsyncadd [#allocation9], %s172
          %s174 = sshll.u32 [#allocation8], 4
          %s175 = int_to_ptr.vmem [resolvable:$true] %s174
          %180 = dma.hbm_to_vmem [thread:$0]  %s3, 1024, %s175, [#allocation9], 64, 64, 4
        $region20: #{tpu_custom_call.1} parent=11 // pred_fallthru
          _
      $region12: #{tpu_custom_call.1} parent=5 // pred_fallthru
        _
      %p181 = scmp.lt.s32.totalorder %s20, 4
      // Predicated region
      $region21: #{tpu_custom_call.1} parent=5 // pred_check
        %p182 = pneg %p181
      $region22: #{tpu_custom_call.1} parent=5 // pred_check_branch
        %184 = sbr.rel (%p182) target = $region24
      $region23: #{tpu_custom_call.1} parent=5 // pred_region
        // Predicated region
        $region25: #{tpu_custom_call.1} parent=23 // pred_check
          %p185 = pneg %p40
        $region26: #{tpu_custom_call.1} parent=23 // pred_check_branch
          %187 = sbr.rel (%p185) target = $region28
        $region27: #{tpu_custom_call.1} parent=23 // pred_region
          %s188 = sand.u32 %s30, 1
          %s189 = scalar_lea.sflag [#allocation3], %s188
          %s190 = sand.u32 %s30, 1
          %s191 = smul.addr %s190, 64
          %s192 = scalar_lea.vmem [#allocation2], %s191
          %s194 = ssub.s32 1024, 1024
          %195 = vsyncadd %s189, %s194
          %s196 = smul.addr %s20, 16
          %s197 = smul.addr %s196, 64
          %s198 = scalar_lea.hbm %s0, %s197
          %s199 = sshll.u32 %s192, 4
          %s200 = int_to_ptr.vmem [resolvable:$true] %s199
          %205 = dma.hbm_to_vmem [thread:$0]  %s198, 1024, %s200, %s189, 64, 64, 4
        $region28: #{tpu_custom_call.1} parent=23 // pred_fallthru
          _
        // Predicated region
        $region29: #{tpu_custom_call.1} parent=23 // pred_check
          %p206 = pneg %p66
        $region30: #{tpu_custom_call.1} parent=23 // pred_check_branch
          %208 = sbr.rel (%p206) target = $region32
        $region31: #{tpu_custom_call.1} parent=23 // pred_region
          %s209 = sand.u32 %s20, 1
          %s210 = scalar_lea.sflag [#allocation6], %s209
          %s211 = sand.u32 %s56, 1
          %s212 = smul.addr %s211, 64
          %s213 = scalar_lea.vmem [#allocation5], %s212
          %s215 = ssub.s32 1024, 1024
          %216 = vsyncadd %s210, %s215
          %s217 = smul.addr %s20, 16
          %s218 = smul.addr %s217, 64
          %s219 = scalar_lea.hbm %s1, %s218
          %s220 = sshll.u32 %s213, 4
          %s221 = int_to_ptr.vmem [resolvable:$true] %s220
          %226 = dma.hbm_to_vmem [thread:$0]  %s219, 1024, %s221, %s210, 64, 64, 4
        $region32: #{tpu_custom_call.1} parent=23 // pred_fallthru
          _
      $region24: #{tpu_custom_call.1} parent=5 // pred_fallthru
        _
      %p227 = scmp.le.s32.totalorder 1, %s20
      %p228 = scmp.lt.s32.totalorder %s20, 5
      %p229 = pnand %p227, %p228
      %p230 = pneg %p229
      // Predicated region
      $region33: #{tpu_custom_call.1} parent=5 // pred_check
        _
      $region34: #{tpu_custom_call.1} parent=5 // pred_check_branch
        %232 = sbr.rel (%p229) target = $region36
      $region35: #{tpu_custom_call.1} parent=5 // pred_region
        %s233 = ssub.s32 %s20, 1
        %s234 = sand.u32 %s33, 1
        %s235 = scalar_lea.sflag [#allocation3], %s234
        %s236 = sand.u32 %s33, 1
        %s237 = smul.addr %s236, 64
        %s238 = scalar_lea.vmem [#allocation2], %s237
        // Predicated region
        $region37: #{tpu_custom_call.1} parent=35 // pred_check
          %p239 = pneg %p46
        $region38: #{tpu_custom_call.1} parent=35 // pred_check_branch
          %241 = sbr.rel (%p239) target = $region40
        $region39: #{tpu_custom_call.1} parent=35 // pred_region
          %242 = dma.done %s235, 1024
        $region40: #{tpu_custom_call.1} parent=35 // pred_fallthru
          _
        %s243 = sand.u32 %s25, 1
        %s244 = scalar_lea.sflag [#allocation6], %s243
        %s245 = sand.u32 %s59, 1
        %s246 = smul.addr %s245, 64
        %s247 = scalar_lea.vmem [#allocation5], %s246
        // Predicated region
        $region41: #{tpu_custom_call.1} parent=35 // pred_check
          %p248 = pneg %p72
        $region42: #{tpu_custom_call.1} parent=35 // pred_check_branch
          %250 = sbr.rel (%p248) target = $region44
        $region43: #{tpu_custom_call.1} parent=35 // pred_region
          %251 = dma.done %s244, 1024
        $region44: #{tpu_custom_call.1} parent=35 // pred_fallthru
          _
        // Predicated region
        $region45: #{tpu_custom_call.1} parent=35 // pred_check
          %p252 = pneg %p93
        $region46: #{tpu_custom_call.1} parent=35 // pred_check_branch
          %254 = sbr.rel (%p252) target = $region48
        $region47: #{tpu_custom_call.1} parent=35 // pred_region
          %255 = dma.done [#allocation6], 1024
        $region48: #{tpu_custom_call.1} parent=35 // pred_fallthru
          _
        // Predicated region
        $region49: #{tpu_custom_call.1} parent=35 // pred_check
          %p256 = pneg %p114
        $region50: #{tpu_custom_call.1} parent=35 // pred_check_branch
          %258 = sbr.rel (%p256) target = $region52
        $region51: #{tpu_custom_call.1} parent=35 // pred_region
          %259 = dma.done [#allocation9], 1024
        $region52: #{tpu_custom_call.1} parent=35 // pred_fallthru
          _
        %s260 = sand.u32 %s33, 1
        %s261 = scalar_lea.sflag [#allocation3], %s260
        %s262 = sand.u32 %s33, 1
        %s263 = smul.addr %s262, 64
        %s264 = scalar_lea.vmem [#allocation2], %s263
        %p265 = pneg %p46
        %p266 = pneg %p43
        %s267 = sand.u32 %s25, 1
        %s268 = scalar_lea.sflag [#allocation6], %s267
        %s269 = sand.u32 %s59, 1
        %s270 = smul.addr %s269, 64
        %s271 = scalar_lea.vmem [#allocation5], %s270
        %p272 = pneg %p72
        %p273 = pneg %p69
        %p274 = pneg %p93
        %p275 = pneg %p90
        %p276 = pneg %p114
        %p277 = pneg %p111
        %p278 = pneg %p140
        %p279 = pneg %p137
        %s280 = sand.u32 %s127, 1
        %s281 = scalar_lea.sflag [#allocation4], %s280
        %s282 = sand.u32 %s127, 1
        %s283 = smul.addr %s282, 128
        %s284 = scalar_lea.vmem [#allocation10], %s283
        %v286 = vld [vmem:[%s238] sm:$0xf]
        %v287 = vld [vmem:[%s238 + $0x4] sm:$0xf]
        %v288 = vld [vmem:[%s238 + $0x8] sm:$0xf]
        %v289 = vld [vmem:[%s238 + $0xc] sm:$0xf]
        %v290 = vld [vmem:[%s238 + $0x10] sm:$0xf]
        %v291 = vld [vmem:[%s238 + $0x14] sm:$0xf]
        %v292 = vld [vmem:[%s238 + $0x18] sm:$0xf]
        %v293 = vld [vmem:[%s238 + $0x1c] sm:$0xf]
        %v294 = vld [vmem:[%s238 + $0x20] sm:$0xf]
        %v295 = vld [vmem:[%s238 + $0x24] sm:$0xf]
        %v296 = vld [vmem:[%s238 + $0x28] sm:$0xf]
        %v297 = vld [vmem:[%s238 + $0x2c] sm:$0xf]
        %v298 = vld [vmem:[%s238 + $0x30] sm:$0xf]
        %v299 = vld [vmem:[%s238 + $0x34] sm:$0xf]
        %v300 = vld [vmem:[%s238 + $0x38] sm:$0xf]
        %v301 = vld [vmem:[%s238 + $0x3c] sm:$0xf]
        %v302 = vld [vmem:[%s247] sm:$0xf]
        %v303 = vld [vmem:[%s247 + $0x4] sm:$0xf]
        %v304 = vld [vmem:[%s247 + $0x8] sm:$0xf]
        %v305 = vld [vmem:[%s247 + $0xc] sm:$0xf]
        %v306 = vld [vmem:[%s247 + $0x10] sm:$0xf]
        %v307 = vld [vmem:[%s247 + $0x14] sm:$0xf]
        %v308 = vld [vmem:[%s247 + $0x18] sm:$0xf]
        %v309 = vld [vmem:[%s247 + $0x1c] sm:$0xf]
        %v310 = vld [vmem:[%s247 + $0x20] sm:$0xf]
        %v311 = vld [vmem:[%s247 + $0x24] sm:$0xf]
        %v312 = vld [vmem:[%s247 + $0x28] sm:$0xf]
        %v313 = vld [vmem:[%s247 + $0x2c] sm:$0xf]
        %v314 = vld [vmem:[%s247 + $0x30] sm:$0xf]
        %v315 = vld [vmem:[%s247 + $0x34] sm:$0xf]
        %v316 = vld [vmem:[%s247 + $0x38] sm:$0xf]
        %v317 = vld [vmem:[%s247 + $0x3c] sm:$0xf]
        %v334 = vunpack.c.l.b16 %v286
        %v335 = vunpack.c.l.b16 %v287
        %v336 = vunpack.c.l.b16 %v288
        %v337 = vunpack.c.l.b16 %v289
        %v338 = vunpack.c.l.b16 %v290
        %v339 = vunpack.c.l.b16 %v291
        %v340 = vunpack.c.l.b16 %v292
        %v341 = vunpack.c.l.b16 %v293
        %v342 = vunpack.c.l.b16 %v294
        %v343 = vunpack.c.l.b16 %v295
        %v344 = vunpack.c.l.b16 %v296
        %v345 = vunpack.c.l.b16 %v297
        %v346 = vunpack.c.l.b16 %v298
        %v347 = vunpack.c.l.b16 %v299
        %v348 = vunpack.c.l.b16 %v300
        %v349 = vunpack.c.l.b16 %v301
        %v350 = vpack.c.b16 %v335, %v334
        %v351 = vpack.c.b16 %v337, %v336
        %v352 = vpack.c.b16 %v339, %v338
        %v353 = vpack.c.b16 %v341, %v340
        %v354 = vpack.c.b16 %v343, %v342
        %v355 = vpack.c.b16 %v345, %v344
        %v356 = vpack.c.b16 %v347, %v346
        %v357 = vpack.c.b16 %v349, %v348
        %v382 = vunpack.c.l.b16 %v302
        %v383 = vunpack.c.l.b16 %v303
        %v384 = vunpack.c.l.b16 %v304
        %v385 = vunpack.c.l.b16 %v305
        %v386 = vunpack.c.l.b16 %v306
        %v387 = vunpack.c.l.b16 %v307
        %v388 = vunpack.c.l.b16 %v308
        %v389 = vunpack.c.l.b16 %v309
        %v390 = vunpack.c.l.b16 %v310
        %v391 = vunpack.c.l.b16 %v311
        %v392 = vunpack.c.l.b16 %v312
        %v393 = vunpack.c.l.b16 %v313
        %v394 = vunpack.c.l.b16 %v314
        %v395 = vunpack.c.l.b16 %v315
        %v396 = vunpack.c.l.b16 %v316
        %v397 = vunpack.c.l.b16 %v317
        %v398 = vpack.c.b16 %v383, %v382
        %v399 = vpack.c.b16 %v385, %v384
        %v400 = vpack.c.b16 %v387, %v386
        %v401 = vpack.c.b16 %v389, %v388
        %v402 = vpack.c.b16 %v391, %v390
        %v403 = vpack.c.b16 %v393, %v392
        %v404 = vpack.c.b16 %v395, %v394
        %v405 = vpack.c.b16 %v397, %v396
        %414 = vmatprep.subr.bf16.mxu0 0
        %415 = vmatpush1.bf16.msra.mxu0 %v398
        %416 = vmatprep.subr.bf16.mxu0 0
        %417 = vmatpush1.bf16.msra.mxu0 %v399
        %418 = vmatprep.subr.bf16.mxu0 0
        %419 = vmatpush1.bf16.msra.mxu0 %v400
        %420 = vmatprep.subr.bf16.mxu0 0
        %421 = vmatpush1.bf16.msra.mxu0 %v401
        %422 = vmatprep.subr.bf16.mxu0 0
        %423 = vmatpush1.bf16.msra.mxu0 %v402
        %424 = vmatprep.subr.bf16.mxu0 0
        %425 = vmatpush1.bf16.msra.mxu0 %v403
        %426 = vmatprep.subr.bf16.mxu0 0
        %427 = vmatpush1.bf16.msra.mxu0 %v404
        %428 = vmatprep.subr.bf16.mxu0 0
        %429 = vmatpush1.bf16.msra.mxu0 %v405
        %430 = vmatprep.subr.bf16.mxu0 0
        %431 = vmatpush1.bf16.msra.mxu0 0
        %432 = vmatprep.subr.bf16.mxu0 0
        %433 = vmatpush1.bf16.msra.mxu0 0
        %434 = vmatprep.subr.bf16.mxu0 0
        %435 = vmatpush1.bf16.msra.mxu0 0
        %436 = vmatprep.subr.bf16.mxu0 0
        %437 = vmatpush1.bf16.msra.mxu0 0
        %438 = vmatprep.subr.bf16.mxu0 0
        %439 = vmatpush1.bf16.msra.mxu0 0
        %440 = vmatprep.subr.bf16.mxu0 0
        %441 = vmatpush1.bf16.msra.mxu0 0
        %442 = vmatprep.subr.bf16.mxu0 0
        %443 = vmatpush1.bf16.msra.mxu0 0
        %444 = vmatprep.subr.bf16.mxu0 0
        %445 = vmatpush1.bf16.msra.mxu0 0
        %446 = vmatprep.mubr.bf16.mxu0 0
        %447 = vmatmul.mubr.bf16.gmra.mrb[0].mxu0 %v350
        %v448 = vpop.f32.mrb[0].mxu0
        %v449 = vadd.f32 0.0, %v448
        %v450 = vpop.f32.mrb[0].mxu0
        %v451 = vpop.f32.mrb[0].mxu0
        %v452 = vadd.f32 0.0, %v451
        %v453 = vpop.f32.mrb[0].mxu0
        %454 = vmatprep.mubr.bf16.mxu0 0
        %455 = vmatmul.mubr.bf16.gmra.mrb[0].mxu0 %v351
        %v456 = vpop.f32.mrb[0].mxu0
        %v457 = vadd.f32 0.0, %v456
        %v458 = vpop.f32.mrb[0].mxu0
        %v459 = vpop.f32.mrb[0].mxu0
        %v460 = vadd.f32 0.0, %v459
        %v461 = vpop.f32.mrb[0].mxu0
        %462 = vmatprep.mubr.bf16.mxu0 0
        %463 = vmatmul.mubr.bf16.gmra.mrb[0].mxu0 %v352
        %v464 = vpop.f32.mrb[0].mxu0
        %v465 = vadd.f32 0.0, %v464
        %v466 = vpop.f32.mrb[0].mxu0
        %v467 = vpop.f32.mrb[0].mxu0
        %v468 = vadd.f32 0.0, %v467
        %v469 = vpop.f32.mrb[0].mxu0
        %470 = vmatprep.mubr.bf16.mxu0 0
        %471 = vmatmul.mubr.bf16.gmra.mrb[0].mxu0 %v353
        %v472 = vpop.f32.mrb[0].mxu0
        %v473 = vadd.f32 0.0, %v472
        %v474 = vpop.f32.mrb[0].mxu0
        %v475 = vpop.f32.mrb[0].mxu0
        %v476 = vadd.f32 0.0, %v475
        %v477 = vpop.f32.mrb[0].mxu0
        %478 = vmatprep.mubr.bf16.mxu0 0
        %479 = vmatmul.mubr.bf16.gmra.mrb[0].mxu0 %v354
        %v480 = vpop.f32.mrb[0].mxu0
        %v481 = vadd.f32 0.0, %v480
        %v482 = vpop.f32.mrb[0].mxu0
        %v483 = vpop.f32.mrb[0].mxu0
        %v484 = vadd.f32 0.0, %v483
        %v485 = vpop.f32.mrb[0].mxu0
        %486 = vmatprep.mubr.bf16.mxu0 0
        %487 = vmatmul.mubr.bf16.gmra.mrb[0].mxu0 %v355
        %v488 = vpop.f32.mrb[0].mxu0
        %v489 = vadd.f32 0.0, %v488
        %v490 = vpop.f32.mrb[0].mxu0
        %v491 = vpop.f32.mrb[0].mxu0
        %v492 = vadd.f32 0.0, %v491
        %v493 = vpop.f32.mrb[0].mxu0
        %494 = vmatprep.mubr.bf16.mxu0 0
        %495 = vmatmul.mubr.bf16.gmra.mrb[0].mxu0 %v356
        %v496 = vpop.f32.mrb[0].mxu0
        %v497 = vadd.f32 0.0, %v496
        %v498 = vpop.f32.mrb[0].mxu0
        %v499 = vpop.f32.mrb[0].mxu0
        %v500 = vadd.f32 0.0, %v499
        %v501 = vpop.f32.mrb[0].mxu0
        %502 = vmatprep.mubr.bf16.mxu0 0
        %503 = vmatmul.mubr.bf16.gmra.mrb[0].mxu0 %v357
        %v504 = vpop.f32.mrb[0].mxu0
        %v505 = vadd.f32 0.0, %v504
        %v506 = vpop.f32.mrb[0].mxu0
        %v507 = vpop.f32.mrb[0].mxu0
        %v508 = vadd.f32 0.0, %v507
        %v509 = vpop.f32.mrb[0].mxu0
        %510 = vdwg.mxu0
        %v511 = vpack.c.bf16 %v452, %v449
        %v512 = vpack.c.bf16 %v460, %v457
        %v513 = vpack.c.bf16 %v468, %v465
        %v514 = vpack.c.bf16 %v476, %v473
        %v515 = vpack.c.bf16 %v484, %v481
        %v516 = vpack.c.bf16 %v492, %v489
        %v517 = vpack.c.bf16 %v500, %v497
        %v518 = vpack.c.bf16 %v508, %v505
        %v519 = vld [vmem:[#allocation7] sm:$0xf]
        %v520 = vld [vmem:[#allocation7 + $0x4] sm:$0xf]
        %v521 = vld [vmem:[#allocation7 + $0x8] sm:$0xf]
        %v522 = vld [vmem:[#allocation7 + $0xc] sm:$0xf]
        %v523 = vld [vmem:[#allocation7 + $0x10] sm:$0xf]
        %v524 = vld [vmem:[#allocation7 + $0x14] sm:$0xf]
        %v525 = vld [vmem:[#allocation7 + $0x18] sm:$0xf]
        %v526 = vld [vmem:[#allocation7 + $0x1c] sm:$0xf]
        %v527 = vld [vmem:[#allocation7 + $0x20] sm:$0xf]
        %v528 = vld [vmem:[#allocation7 + $0x24] sm:$0xf]
        %v529 = vld [vmem:[#allocation7 + $0x28] sm:$0xf]
        %v530 = vld [vmem:[#allocation7 + $0x2c] sm:$0xf]
        %v531 = vld [vmem:[#allocation7 + $0x30] sm:$0xf]
        %v532 = vld [vmem:[#allocation7 + $0x34] sm:$0xf]
        %v533 = vld [vmem:[#allocation7 + $0x38] sm:$0xf]
        %v534 = vld [vmem:[#allocation7 + $0x3c] sm:$0xf]
        %v551 = vunpack.c.l.b16 %v519
        %v552 = vunpack.c.l.b16 %v520
        %v553 = vunpack.c.l.b16 %v521
        %v554 = vunpack.c.l.b16 %v522
        %v555 = vunpack.c.l.b16 %v523
        %v556 = vunpack.c.l.b16 %v524
        %v557 = vunpack.c.l.b16 %v525
        %v558 = vunpack.c.l.b16 %v526
        %v559 = vunpack.c.l.b16 %v527
        %v560 = vunpack.c.l.b16 %v528
        %v561 = vunpack.c.l.b16 %v529
        %v562 = vunpack.c.l.b16 %v530
        %v563 = vunpack.c.l.b16 %v531
        %v564 = vunpack.c.l.b16 %v532
        %v565 = vunpack.c.l.b16 %v533
        %v566 = vunpack.c.l.b16 %v534
        %v567 = vpack.c.b16 %v552, %v551
        %v568 = vpack.c.b16 %v554, %v553
        %v569 = vpack.c.b16 %v556, %v555
        %v570 = vpack.c.b16 %v558, %v557
        %v571 = vpack.c.b16 %v560, %v559
        %v572 = vpack.c.b16 %v562, %v561
        %v573 = vpack.c.b16 %v564, %v563
        %v574 = vpack.c.b16 %v566, %v565
        %583 = vmatprep.subr.bf16.mxu0 0
        %584 = vmatpush1.bf16.msra.mxu0 %v567
        %585 = vmatprep.subr.bf16.mxu0 0
        %586 = vmatpush1.bf16.msra.mxu0 %v568
        %587 = vmatprep.subr.bf16.mxu0 0
        %588 = vmatpush1.bf16.msra.mxu0 %v569
        %589 = vmatprep.subr.bf16.mxu0 0
        %590 = vmatpush1.bf16.msra.mxu0 %v570
        %591 = vmatprep.subr.bf16.mxu0 0
        %592 = vmatpush1.bf16.msra.mxu0 %v571
        %593 = vmatprep.subr.bf16.mxu0 0
        %594 = vmatpush1.bf16.msra.mxu0 %v572
        %595 = vmatprep.subr.bf16.mxu0 0
        %596 = vmatpush1.bf16.msra.mxu0 %v573
        %597 = vmatprep.subr.bf16.mxu0 0
        %598 = vmatpush1.bf16.msra.mxu0 %v574
        %599 = vmatprep.subr.bf16.mxu0 0
        %600 = vmatpush1.bf16.msra.mxu0 0
        %601 = vmatprep.subr.bf16.mxu0 0
        %602 = vmatpush1.bf16.msra.mxu0 0
        %603 = vmatprep.subr.bf16.mxu0 0
        %604 = vmatpush1.bf16.msra.mxu0 0
        %605 = vmatprep.subr.bf16.mxu0 0
        %606 = vmatpush1.bf16.msra.mxu0 0
        %607 = vmatprep.subr.bf16.mxu0 0
        %608 = vmatpush1.bf16.msra.mxu0 0
        %609 = vmatprep.subr.bf16.mxu0 0
        %610 = vmatpush1.bf16.msra.mxu0 0
        %611 = vmatprep.subr.bf16.mxu0 0
        %612 = vmatpush1.bf16.msra.mxu0 0
        %613 = vmatprep.subr.bf16.mxu0 0
        %614 = vmatpush1.bf16.msra.mxu0 0
        %615 = vmatprep.mubr.bf16.mxu0 0
        %616 = vmatmul.mubr.bf16.gmra.mrb[0].mxu0 %v511
        %v617 = vpop.f32.mrb[0].mxu0
        %v618 = vadd.f32 0.0, %v617
        %v619 = vpop.f32.mrb[0].mxu0
        %v620 = vpop.f32.mrb[0].mxu0
        %v621 = vadd.f32 0.0, %v620
        %v622 = vpop.f32.mrb[0].mxu0
        %623 = vmatprep.mubr.bf16.mxu0 0
        %624 = vmatmul.mubr.bf16.gmra.mrb[0].mxu0 %v512
        %v625 = vpop.f32.mrb[0].mxu0
        %v626 = vadd.f32 0.0, %v625
        %v627 = vpop.f32.mrb[0].mxu0
        %v628 = vpop.f32.mrb[0].mxu0
        %v629 = vadd.f32 0.0, %v628
        %v630 = vpop.f32.mrb[0].mxu0
        %631 = vmatprep.mubr.bf16.mxu0 0
        %632 = vmatmul.mubr.bf16.gmra.mrb[0].mxu0 %v513
        %v633 = vpop.f32.mrb[0].mxu0
        %v634 = vadd.f32 0.0, %v633
        %v635 = vpop.f32.mrb[0].mxu0
        %v636 = vpop.f32.mrb[0].mxu0
        %v637 = vadd.f32 0.0, %v636
        %v638 = vpop.f32.mrb[0].mxu0
        %639 = vmatprep.mubr.bf16.mxu0 0
        %640 = vmatmul.mubr.bf16.gmra.mrb[0].mxu0 %v514
        %v641 = vpop.f32.mrb[0].mxu0
        %v642 = vadd.f32 0.0, %v641
        %v643 = vpop.f32.mrb[0].mxu0
        %v644 = vpop.f32.mrb[0].mxu0
        %v645 = vadd.f32 0.0, %v644
        %v646 = vpop.f32.mrb[0].mxu0
        %647 = vmatprep.mubr.bf16.mxu0 0
        %648 = vmatmul.mubr.bf16.gmra.mrb[0].mxu0 %v515
        %v649 = vpop.f32.mrb[0].mxu0
        %v650 = vadd.f32 0.0, %v649
        %v651 = vpop.f32.mrb[0].mxu0
        %v652 = vpop.f32.mrb[0].mxu0
        %v653 = vadd.f32 0.0, %v652
        %v654 = vpop.f32.mrb[0].mxu0
        %655 = vmatprep.mubr.bf16.mxu0 0
        %656 = vmatmul.mubr.bf16.gmra.mrb[0].mxu0 %v516
        %v657 = vpop.f32.mrb[0].mxu0
        %v658 = vadd.f32 0.0, %v657
        %v659 = vpop.f32.mrb[0].mxu0
        %v660 = vpop.f32.mrb[0].mxu0
        %v661 = vadd.f32 0.0, %v660
        %v662 = vpop.f32.mrb[0].mxu0
        %663 = vmatprep.mubr.bf16.mxu0 0
        %664 = vmatmul.mubr.bf16.gmra.mrb[0].mxu0 %v517
        %v665 = vpop.f32.mrb[0].mxu0
        %v666 = vadd.f32 0.0, %v665
        %v667 = vpop.f32.mrb[0].mxu0
        %v668 = vpop.f32.mrb[0].mxu0
        %v669 = vadd.f32 0.0, %v668
        %v670 = vpop.f32.mrb[0].mxu0
        %671 = vmatprep.mubr.bf16.mxu0 0
        %672 = vmatmul.mubr.bf16.gmra.mrb[0].mxu0 %v518
        %v673 = vpop.f32.mrb[0].mxu0
        %v674 = vadd.f32 0.0, %v673
        %v675 = vpop.f32.mrb[0].mxu0
        %v676 = vpop.f32.mrb[0].mxu0
        %v677 = vadd.f32 0.0, %v676
        %v678 = vpop.f32.mrb[0].mxu0
        %679 = vdwg.mxu0
        %v680 = vmax.f32 %v618, 0.0
        %v681 = vmax.f32 %v621, 0.0
        %v682 = vmax.f32 %v626, 0.0
        %v683 = vmax.f32 %v629, 0.0
        %v684 = vmax.f32 %v634, 0.0
        %v685 = vmax.f32 %v637, 0.0
        %v686 = vmax.f32 %v642, 0.0
        %v687 = vmax.f32 %v645, 0.0
        %v688 = vmax.f32 %v650, 0.0
        %v689 = vmax.f32 %v653, 0.0
        %v690 = vmax.f32 %v658, 0.0
        %v691 = vmax.f32 %v661, 0.0
        %v692 = vmax.f32 %v666, 0.0
        %v693 = vmax.f32 %v669, 0.0
        %v694 = vmax.f32 %v674, 0.0
        %v695 = vmax.f32 %v677, 0.0
        %v696 = vpack.c.bf16 %v681, %v680
        %v697 = vpack.c.bf16 %v683, %v682
        %v698 = vpack.c.bf16 %v685, %v684
        %v699 = vpack.c.bf16 %v687, %v686
        %v700 = vpack.c.bf16 %v689, %v688
        %v701 = vpack.c.bf16 %v691, %v690
        %v702 = vpack.c.bf16 %v693, %v692
        %v703 = vpack.c.bf16 %v695, %v694
        %704 = vmatprep.subr.bf16.mxu0 0
        %705 = vmatpush1.bf16.msra.mxu0 %v696
        %706 = vmatprep.subr.bf16.mxu0 0
        %707 = vmatpush1.bf16.msra.mxu0 %v697
        %708 = vmatprep.subr.bf16.mxu0 0
        %709 = vmatpush1.bf16.msra.mxu0 %v698
        %710 = vmatprep.subr.bf16.mxu0 0
        %711 = vmatpush1.bf16.msra.mxu0 %v699
        %712 = vmatprep.subr.bf16.mxu0 0
        %713 = vmatpush1.bf16.msra.mxu0 %v700
        %714 = vmatprep.subr.bf16.mxu0 0
        %715 = vmatpush1.bf16.msra.mxu0 %v701
        %716 = vmatprep.subr.bf16.mxu0 0
        %717 = vmatpush1.bf16.msra.mxu0 %v702
        %718 = vmatprep.subr.bf16.mxu0 0
        %719 = vmatpush1.bf16.msra.mxu0 %v703
        %720 = vmatprep.subr.bf16.mxu0 0
        %721 = vmatpush1.bf16.msra.mxu0 0
        %722 = vmatprep.subr.bf16.mxu0 0
        %723 = vmatpush1.bf16.msra.mxu0 0
        %724 = vmatprep.subr.bf16.mxu0 0
        %725 = vmatpush1.bf16.msra.mxu0 0
        %726 = vmatprep.subr.bf16.mxu0 0
        %727 = vmatpush1.bf16.msra.mxu0 0
        %728 = vmatprep.subr.bf16.mxu0 0
        %729 = vmatpush1.bf16.msra.mxu0 0
        %730 = vmatprep.subr.bf16.mxu0 0
        %731 = vmatpush1.bf16.msra.mxu0 0
        %732 = vmatprep.subr.bf16.mxu0 0
        %733 = vmatpush1.bf16.msra.mxu0 0
        %734 = vmatprep.subr.bf16.mxu0 0
        %735 = vmatpush1.bf16.msra.mxu0 0
        %736 = vmatprep.mubr.bf16.mxu0 0
        %737 = vmatmul.mubr.bf16.gmra.mrb[0].mxu0 %v350
        %v738 = vpop.f32.mrb[0].mxu0
        %v739 = vadd.f32 0.0, %v738
        %v740 = vpop.f32.mrb[0].mxu0
        %v741 = vpop.f32.mrb[0].mxu0
        %v742 = vadd.f32 0.0, %v741
        %v743 = vpop.f32.mrb[0].mxu0
        %744 = vmatprep.mubr.bf16.mxu0 0
        %745 = vmatmul.mubr.bf16.gmra.mrb[0].mxu0 %v351
        %v746 = vpop.f32.mrb[0].mxu0
        %v747 = vadd.f32 0.0, %v746
        %v748 = vpop.f32.mrb[0].mxu0
        %v749 = vpop.f32.mrb[0].mxu0
        %v750 = vadd.f32 0.0, %v749
        %v751 = vpop.f32.mrb[0].mxu0
        %752 = vmatprep.mubr.bf16.mxu0 0
        %753 = vmatmul.mubr.bf16.gmra.mrb[0].mxu0 %v352
        %v754 = vpop.f32.mrb[0].mxu0
        %v755 = vadd.f32 0.0, %v754
        %v756 = vpop.f32.mrb[0].mxu0
        %v757 = vpop.f32.mrb[0].mxu0
        %v758 = vadd.f32 0.0, %v757
        %v759 = vpop.f32.mrb[0].mxu0
        %760 = vmatprep.mubr.bf16.mxu0 0
        %761 = vmatmul.mubr.bf16.gmra.mrb[0].mxu0 %v353
        %v762 = vpop.f32.mrb[0].mxu0
        %v763 = vadd.f32 0.0, %v762
        %v764 = vpop.f32.mrb[0].mxu0
        %v765 = vpop.f32.mrb[0].mxu0
        %v766 = vadd.f32 0.0, %v765
        %v767 = vpop.f32.mrb[0].mxu0
        %768 = vmatprep.mubr.bf16.mxu0 0
        %769 = vmatmul.mubr.bf16.gmra.mrb[0].mxu0 %v354
        %v770 = vpop.f32.mrb[0].mxu0
        %v771 = vadd.f32 0.0, %v770
        %v772 = vpop.f32.mrb[0].mxu0
        %v773 = vpop.f32.mrb[0].mxu0
        %v774 = vadd.f32 0.0, %v773
        %v775 = vpop.f32.mrb[0].mxu0
        %776 = vmatprep.mubr.bf16.mxu0 0
        %777 = vmatmul.mubr.bf16.gmra.mrb[0].mxu0 %v355
        %v778 = vpop.f32.mrb[0].mxu0
        %v779 = vadd.f32 0.0, %v778
        %v780 = vpop.f32.mrb[0].mxu0
        %v781 = vpop.f32.mrb[0].mxu0
        %v782 = vadd.f32 0.0, %v781
        %v783 = vpop.f32.mrb[0].mxu0
        %784 = vmatprep.mubr.bf16.mxu0 0
        %785 = vmatmul.mubr.bf16.gmra.mrb[0].mxu0 %v356
        %v786 = vpop.f32.mrb[0].mxu0
        %v787 = vadd.f32 0.0, %v786
        %v788 = vpop.f32.mrb[0].mxu0
        %v789 = vpop.f32.mrb[0].mxu0
        %v790 = vadd.f32 0.0, %v789
        %v791 = vpop.f32.mrb[0].mxu0
        %792 = vmatprep.mubr.bf16.mxu0 0
        %793 = vmatmul.mubr.bf16.gmra.mrb[0].mxu0 %v357
        %v794 = vpop.f32.mrb[0].mxu0
        %v795 = vadd.f32 0.0, %v794
        %v796 = vpop.f32.mrb[0].mxu0
        %v797 = vpop.f32.mrb[0].mxu0
        %v798 = vadd.f32 0.0, %v797
        %v799 = vpop.f32.mrb[0].mxu0
        %800 = vdwg.mxu0
        %v801 = vpack.c.bf16 %v742, %v739
        %v802 = vpack.c.bf16 %v750, %v747
        %v803 = vpack.c.bf16 %v758, %v755
        %v804 = vpack.c.bf16 %v766, %v763
        %v805 = vpack.c.bf16 %v774, %v771
        %v806 = vpack.c.bf16 %v782, %v779
        %v807 = vpack.c.bf16 %v790, %v787
        %v808 = vpack.c.bf16 %v798, %v795
        %v809 = vld [vmem:[#allocation8] sm:$0xf]
        %v810 = vld [vmem:[#allocation8 + $0x4] sm:$0xf]
        %v811 = vld [vmem:[#allocation8 + $0x8] sm:$0xf]
        %v812 = vld [vmem:[#allocation8 + $0xc] sm:$0xf]
        %v813 = vld [vmem:[#allocation8 + $0x10] sm:$0xf]
        %v814 = vld [vmem:[#allocation8 + $0x14] sm:$0xf]
        %v815 = vld [vmem:[#allocation8 + $0x18] sm:$0xf]
        %v816 = vld [vmem:[#allocation8 + $0x1c] sm:$0xf]
        %v817 = vld [vmem:[#allocation8 + $0x20] sm:$0xf]
        %v818 = vld [vmem:[#allocation8 + $0x24] sm:$0xf]
        %v819 = vld [vmem:[#allocation8 + $0x28] sm:$0xf]
        %v820 = vld [vmem:[#allocation8 + $0x2c] sm:$0xf]
        %v821 = vld [vmem:[#allocation8 + $0x30] sm:$0xf]
        %v822 = vld [vmem:[#allocation8 + $0x34] sm:$0xf]
        %v823 = vld [vmem:[#allocation8 + $0x38] sm:$0xf]
        %v824 = vld [vmem:[#allocation8 + $0x3c] sm:$0xf]
        %v841 = vunpack.c.l.b16 %v809
        %v842 = vunpack.c.l.b16 %v810
        %v843 = vunpack.c.l.b16 %v811
        %v844 = vunpack.c.l.b16 %v812
        %v845 = vunpack.c.l.b16 %v813
        %v846 = vunpack.c.l.b16 %v814
        %v847 = vunpack.c.l.b16 %v815
        %v848 = vunpack.c.l.b16 %v816
        %v849 = vunpack.c.l.b16 %v817
        %v850 = vunpack.c.l.b16 %v818
        %v851 = vunpack.c.l.b16 %v819
        %v852 = vunpack.c.l.b16 %v820
        %v853 = vunpack.c.l.b16 %v821
        %v854 = vunpack.c.l.b16 %v822
        %v855 = vunpack.c.l.b16 %v823
        %v856 = vunpack.c.l.b16 %v824
        %v857 = vpack.c.b16 %v842, %v841
        %v858 = vpack.c.b16 %v844, %v843
        %v859 = vpack.c.b16 %v846, %v845
        %v860 = vpack.c.b16 %v848, %v847
        %v861 = vpack.c.b16 %v850, %v849
        %v862 = vpack.c.b16 %v852, %v851
        %v863 = vpack.c.b16 %v854, %v853
        %v864 = vpack.c.b16 %v856, %v855
        %873 = vmatprep.subr.bf16.mxu0 0
        %874 = vmatpush1.bf16.msra.mxu0 %v857
        %875 = vmatprep.subr.bf16.mxu0 0
        %876 = vmatpush1.bf16.msra.mxu0 %v858
        %877 = vmatprep.subr.bf16.mxu0 0
        %878 = vmatpush1.bf16.msra.mxu0 %v859
        %879 = vmatprep.subr.bf16.mxu0 0
        %880 = vmatpush1.bf16.msra.mxu0 %v860
        %881 = vmatprep.subr.bf16.mxu0 0
        %882 = vmatpush1.bf16.msra.mxu0 %v861
        %883 = vmatprep.subr.bf16.mxu0 0
        %884 = vmatpush1.bf16.msra.mxu0 %v862
        %885 = vmatprep.subr.bf16.mxu0 0
        %886 = vmatpush1.bf16.msra.mxu0 %v863
        %887 = vmatprep.subr.bf16.mxu0 0
        %888 = vmatpush1.bf16.msra.mxu0 %v864
        %889 = vmatprep.subr.bf16.mxu0 0
        %890 = vmatpush1.bf16.msra.mxu0 0
        %891 = vmatprep.subr.bf16.mxu0 0
        %892 = vmatpush1.bf16.msra.mxu0 0
        %893 = vmatprep.subr.bf16.mxu0 0
        %894 = vmatpush1.bf16.msra.mxu0 0
        %895 = vmatprep.subr.bf16.mxu0 0
        %896 = vmatpush1.bf16.msra.mxu0 0
        %897 = vmatprep.subr.bf16.mxu0 0
        %898 = vmatpush1.bf16.msra.mxu0 0
        %899 = vmatprep.subr.bf16.mxu0 0
        %900 = vmatpush1.bf16.msra.mxu0 0
        %901 = vmatprep.subr.bf16.mxu0 0
        %902 = vmatpush1.bf16.msra.mxu0 0
        %903 = vmatprep.subr.bf16.mxu0 0
        %904 = vmatpush1.bf16.msra.mxu0 0
        %905 = vmatprep.mubr.bf16.mxu0 0
        %906 = vmatmul.mubr.bf16.gmra.mrb[0].mxu0 %v801
        %v907 = vpop.f32.mrb[0].mxu0
        %v908 = vadd.f32 0.0, %v907
        %v909 = vpop.f32.mrb[0].mxu0
        %v910 = vpop.f32.mrb[0].mxu0
        %v911 = vadd.f32 0.0, %v910
        %v912 = vpop.f32.mrb[0].mxu0
        %913 = vmatprep.mubr.bf16.mxu0 0
        %914 = vmatmul.mubr.bf16.gmra.mrb[0].mxu0 %v802
        %v915 = vpop.f32.mrb[0].mxu0
        %v916 = vadd.f32 0.0, %v915
        %v917 = vpop.f32.mrb[0].mxu0
        %v918 = vpop.f32.mrb[0].mxu0
        %v919 = vadd.f32 0.0, %v918
        %v920 = vpop.f32.mrb[0].mxu0
        %921 = vmatprep.mubr.bf16.mxu0 0
        %922 = vmatmul.mubr.bf16.gmra.mrb[0].mxu0 %v803
        %v923 = vpop.f32.mrb[0].mxu0
        %v924 = vadd.f32 0.0, %v923
        %v925 = vpop.f32.mrb[0].mxu0
        %v926 = vpop.f32.mrb[0].mxu0
        %v927 = vadd.f32 0.0, %v926
        %v928 = vpop.f32.mrb[0].mxu0
        %929 = vmatprep.mubr.bf16.mxu0 0
        %930 = vmatmul.mubr.bf16.gmra.mrb[0].mxu0 %v804
        %v931 = vpop.f32.mrb[0].mxu0
        %v932 = vadd.f32 0.0, %v931
        %v933 = vpop.f32.mrb[0].mxu0
        %v934 = vpop.f32.mrb[0].mxu0
        %v935 = vadd.f32 0.0, %v934
        %v936 = vpop.f32.mrb[0].mxu0
        %937 = vmatprep.mubr.bf16.mxu0 0
        %938 = vmatmul.mubr.bf16.gmra.mrb[0].mxu0 %v805
        %v939 = vpop.f32.mrb[0].mxu0
        %v940 = vadd.f32 0.0, %v939
        %v941 = vpop.f32.mrb[0].mxu0
        %v942 = vpop.f32.mrb[0].mxu0
        %v943 = vadd.f32 0.0, %v942
        %v944 = vpop.f32.mrb[0].mxu0
        %945 = vmatprep.mubr.bf16.mxu0 0
        %946 = vmatmul.mubr.bf16.gmra.mrb[0].mxu0 %v806
        %v947 = vpop.f32.mrb[0].mxu0
        %v948 = vadd.f32 0.0, %v947
        %v949 = vpop.f32.mrb[0].mxu0
        %v950 = vpop.f32.mrb[0].mxu0
        %v951 = vadd.f32 0.0, %v950
        %v952 = vpop.f32.mrb[0].mxu0
        %953 = vmatprep.mubr.bf16.mxu0 0
        %954 = vmatmul.mubr.bf16.gmra.mrb[0].mxu0 %v807
        %v955 = vpop.f32.mrb[0].mxu0
        %v956 = vadd.f32 0.0, %v955
        %v957 = vpop.f32.mrb[0].mxu0
        %v958 = vpop.f32.mrb[0].mxu0
        %v959 = vadd.f32 0.0, %v958
        %v960 = vpop.f32.mrb[0].mxu0
        %961 = vmatprep.mubr.bf16.mxu0 0
        %962 = vmatmul.mubr.bf16.gmra.mrb[0].mxu0 %v808
        %v963 = vpop.f32.mrb[0].mxu0
        %v964 = vadd.f32 0.0, %v963
        %v965 = vpop.f32.mrb[0].mxu0
        %v966 = vpop.f32.mrb[0].mxu0
        %v967 = vadd.f32 0.0, %v966
        %v968 = vpop.f32.mrb[0].mxu0
        %969 = vdwg.mxu0
        %970 = vst [vmem:[%s284] sm:$0xff] %v908
        %971 = vst [vmem:[%s284 + $0x8] sm:$0xff] %v911
        %972 = vst [vmem:[%s284 + $0x10] sm:$0xff] %v916
        %973 = vst [vmem:[%s284 + $0x18] sm:$0xff] %v919
        %974 = vst [vmem:[%s284 + $0x20] sm:$0xff] %v924
        %975 = vst [vmem:[%s284 + $0x28] sm:$0xff] %v927
        %976 = vst [vmem:[%s284 + $0x30] sm:$0xff] %v932
        %977 = vst [vmem:[%s284 + $0x38] sm:$0xff] %v935
        %978 = vst [vmem:[%s284 + $0x40] sm:$0xff] %v940
        %979 = vst [vmem:[%s284 + $0x48] sm:$0xff] %v943
        %980 = vst [vmem:[%s284 + $0x50] sm:$0xff] %v948
        %981 = vst [vmem:[%s284 + $0x58] sm:$0xff] %v951
        %982 = vst [vmem:[%s284 + $0x60] sm:$0xff] %v956
        %983 = vst [vmem:[%s284 + $0x68] sm:$0xff] %v959
        %984 = vst [vmem:[%s284 + $0x70] sm:$0xff] %v964
        %985 = vst [vmem:[%s284 + $0x78] sm:$0xff] %v967
        %s986 = sand.u32 %s127, 1
        %s987 = scalar_lea.sflag [#allocation4], %s986
        %s988 = sand.u32 %s127, 1
        %s989 = smul.addr %s988, 128
        %s990 = scalar_lea.vmem [#allocation10], %s989
        // Predicated region
        $region53: #{tpu_custom_call.1} parent=35 // pred_check
          %p991 = pneg %p137
        $region54: #{tpu_custom_call.1} parent=35 // pred_check_branch
          %993 = sbr.rel (%p991) target = $region56
        $region55: #{tpu_custom_call.1} parent=35 // pred_region
          %s995 = ssub.s32 2048, 2048
          %996 = vsyncadd %s987, %s995
          %s997 = smul.addr %s25, 16
          %s998 = smul.addr %s997, 128
          %s999 = scalar_lea.hbm %s4, %s998
          %s1000 = sshll.u32 %s990, 4
          %s1001 = int_to_ptr.vmem [resolvable:$true] %s1000
          %1006 = dma.vmem_to_hbm [thread:$0]  %s1001, 2048, %s999, %s987, 128, 128, 8
        $region56: #{tpu_custom_call.1} parent=35 // pred_fallthru
          _
      $region36: #{tpu_custom_call.1} parent=5 // pred_fallthru
        _
      %p1007 = scmp.le.s32.totalorder 2, %s20
      // Predicated region
      $region57: #{tpu_custom_call.1} parent=5 // pred_check
        %p1008 = pneg %p1007
      $region58: #{tpu_custom_call.1} parent=5 // pred_check_branch
        %1010 = sbr.rel (%p1008) target = $region60
      $region59: #{tpu_custom_call.1} parent=5 // pred_region
        %s1011 = ssub.s32 %s20, 2
        // Predicated region
        $region61: #{tpu_custom_call.1} parent=59 // pred_check
          %p1012 = pneg %p143
        $region62: #{tpu_custom_call.1} parent=59 // pred_check_branch
          %1014 = sbr.rel (%p1012) target = $region64
        $region63: #{tpu_custom_call.1} parent=59 // pred_region
          %s1015 = sand.u32 %s128, 1
          %s1016 = scalar_lea.sflag [#allocation4], %s1015
          %s1017 = sand.u32 %s128, 1
          %s1018 = smul.addr %s1017, 128
          %s1019 = scalar_lea.vmem [#allocation10], %s1018
          %1020 = dma.done %s1016, 2048
        $region64: #{tpu_custom_call.1} parent=59 // pred_fallthru
          _
      $region60: #{tpu_custom_call.1} parent=5 // pred_fallthru
        _
    $region6: #{tpu_custom_call.1} parent=1 // loop_footer
      %s24 = sadd.s32 1, %s20
    $region7: #{tpu_custom_call.1} parent=1 // loop_footer_branch
      %19 = sbr.rel target = $region3
    $region8: #{tpu_custom_call.1} parent=1 // loop_exit
      _
    %1021 = vsyncpa [#allocation3], 1
    %s1022 = scalar_lea.sflag [#allocation3], 1
    %1023 = vsyncpa %s1022, 1
    %1024 = vsyncpa [#allocation6], 1
    %s1025 = scalar_lea.sflag [#allocation6], 1
    %1026 = vsyncpa %s1025, 1
    %1027 = vsyncpa [#allocation9], 1
    %1028 = vsyncpa [#allocation4], 1
    %s1029 = scalar_lea.sflag [#allocation4], 1
    %1030 = vsyncpa %s1029, 1

</llo_original>
